<compile_context>
chip_gen: v7x
topology: tpu7x:2x2x1
jax: 0.10.0
libtpu: 0.0.40
codegen_flags: <defaults>
</compile_context>

<pallas_src>
import jax
import jax.numpy as jnp
from jax.experimental import pallas as pl
from jax.experimental.pallas import tpu as pltpu


def _cdiv(a, b):
    return -(-a // b)


def _round_up(a, b):
    return _cdiv(a, b) * b


def _ce_overlap_kernel(t_ref, x_ref, sum_ref, cnt_ref):
    """One (tn, C) tile of rows; accumulates per-row partials into resident
    output blocks (one block per core along the leading 'parallel' axis)."""
    i = pl.program_id(1)  # position along the 'arbitrary' (accumulation) axis

    @pl.when(i == 0)
    def _():
        sum_ref[...] = jnp.zeros_like(sum_ref)
        cnt_ref[...] = jnp.zeros_like(cnt_ref)

    x = x_ref[...].astype(jnp.float32)   # (tn, C) logits, widened in-kernel
    t = t_ref[...]                       # (tn, 1) int32 targets

    # softmax over the class dim -- this is what the module feeds to CE.
    m = jnp.max(x, axis=-1, keepdims=True)
    e = jnp.exp(x - m)
    # exact reciprocal: only tn of them per tile, negligible vs the 2*tn*C exps,
    # and it keeps the 1e-5 tolerance vs the f32 reference with no risk.
    p = e * pl.reciprocal(jnp.sum(e, axis=-1, keepdims=True), approx=False)

    # CrossEntropyLoss re-applies log_softmax on p.  p ∈ [0,1] so exp(p) cannot
    # overflow -> no second max-subtraction needed.
    lse = jnp.log(jnp.sum(jnp.exp(p), axis=-1, keepdims=True))       # (tn, 1)

    # gather p[row, t[row]] via a one-hot masked reduce (no dynamic gather on
    # TPU); subtract lse only on the per-row scalar, not the whole (tn, C) tile.
    col = jax.lax.broadcasted_iota(jnp.int32, p.shape, 1)
    p_t = jnp.sum(jnp.where(col == t, p, 0.0), axis=-1, keepdims=True)  # (tn,1)
    picked = p_t - lse                                                  # (tn,1)

    valid = (t != 0).astype(jnp.float32)   # ignore_index=0 (also padded rows)

    sum_ref[...] += valid * picked
    cnt_ref[...] += valid


def cross_entropy_overlap_loss(inputs, outputs, *, tn=512, num_cores=2,
                               vmem_limit_bytes=None):
    """inputs: int targets (...,); outputs: logits (..., C) in native dtype."""
    C = outputs.shape[-1]
    x = outputs.reshape(-1, C)                 # keep native dtype (bf16 OK)
    t = inputs.reshape(-1).astype(jnp.int32)
    N = x.shape[0]

    # Effective row tile: multiple of 8 sublanes, no bigger than needed.
    tn = max(8, min(_round_up(tn, 8), _round_up(N, 8)))
    # TODO(synk): for very large C (LLM vocab) add a C-tiling grid axis with an
    # online logsumexp instead of loading full rows into VMEM.

    tiles_total = _cdiv(N, tn)
    tiles_per_core = _cdiv(tiles_total, num_cores)
    n_pad = num_cores * tiles_per_core * tn

    if n_pad != N:
        # padded rows get target == 0 (ignore_index) -> excluded from sum & cnt
        x = jnp.pad(x, ((0, n_pad - N), (0, 0)))
        t = jnp.pad(t, (0, n_pad - N))
    t = t.reshape(n_pad, 1)

    def row_map(c, i, tpc=tiles_per_core):
        return (c * tpc + i, 0)

    def out_map(c, i):
        return (c, 0, 0)

    itemsize = jnp.dtype(x.dtype).itemsize
    cost = pl.CostEstimate(
        flops=8 * n_pad * C,
        transcendentals=2 * n_pad * C + 2 * n_pad,
        bytes_accessed=n_pad * C * itemsize + n_pad * 4
        + 2 * num_cores * tn * 4,
    )

    cp_kwargs = dict(dimension_semantics=("parallel", "arbitrary"))
    if vmem_limit_bytes is not None:
        cp_kwargs["vmem_limit_bytes"] = vmem_limit_bytes

    sums, cnts = pl.pallas_call(
        _ce_overlap_kernel,
        out_shape=(
            jax.ShapeDtypeStruct((num_cores, tn, 1), jnp.float32),
            jax.ShapeDtypeStruct((num_cores, tn, 1), jnp.float32),
        ),
        grid_spec=pltpu.PrefetchScalarGridSpec(
            num_scalar_prefetch=0,
            grid=(num_cores, tiles_per_core),
            in_specs=[
                pl.BlockSpec((tn, 1), row_map),   # targets
                pl.BlockSpec((tn, C), row_map),   # logits (full class dim)
            ],
            out_specs=(
                pl.BlockSpec((None, tn, 1), out_map),  # per-core row sums
                pl.BlockSpec((None, tn, 1), out_map),  # per-core row counts
            ),
        ),
        compiler_params=pltpu.CompilerParams(**cp_kwargs),
        cost_estimate=cost,
    )(t, x)

    # Final tiny reduce + divide in plain JAX.  If every target is 0
    # (all ignored), this divides by zero and yields NaN -- same as PyTorch.
    return jnp.sum(sums) / jnp.sum(cnts)


def _ref_loss(inputs, outputs):
    C = outputs.shape[-1]
    p = jax.nn.softmax(outputs.astype(jnp.float32), axis=-1).reshape(-1, C)
    lsm = jax.nn.log_softmax(p, axis=-1)
    t = inputs.reshape(-1)
    valid = t != 0
    picked = jnp.take_along_axis(lsm, t[:, None].astype(jnp.int32), axis=-1)[:, 0]
    return jnp.sum(jnp.where(valid, picked, 0.0)) / jnp.sum(valid)


if __name__ == "__main__":
    key = jax.random.PRNGKey(0)
    k1, k2, k3, k4 = jax.random.split(key, 4)

    # Case 1: small shape matching the module (seq data), with explicit ignores.
    B, T, C = 2, 8, 32
    outputs = jax.random.normal(k1, (B, T, C), dtype=jnp.float32)
    inputs = jax.random.randint(k2, (B, T), 1, C, dtype=jnp.int32)
    inputs = inputs.at[0, 0].set(0).at[1, 3].set(0)

    loss = jax.block_until_ready(cross_entropy_overlap_loss(inputs, outputs))
    ref = jax.block_until_ready(_ref_loss(inputs, outputs))
    assert jnp.allclose(loss, ref, rtol=1e-5, atol=1e-5), (loss, ref)

    # Case 2: non-divisible row count + multi-step accumulation (exercises
    # padding, the 2-D grid and the resident accumulator blocks).
    B2, T2, C2 = 3, 50, 256
    outputs2 = jax.random.normal(k3, (B2, T2, C2), dtype=jnp.float32)
    inputs2 = jax.random.randint(k4, (B2, T2), 0, C2, dtype=jnp.int32)

    loss2 = jax.block_until_ready(
        cross_entropy_overlap_loss(inputs2, outputs2, tn=64))
    ref2 = jax.block_until_ready(_ref_loss(inputs2, outputs2))
    assert jnp.allclose(loss2, ref2, rtol=1e-5, atol=1e-5), (loss2, ref2)

    print("KERNEL_OK")
</pallas_src>

<mosaic_0001>
module attributes {stable_mosaic.version = 11 : i64} {
  func.func @_ce_overlap_kernel(%arg0: i32, %arg1: i32, %arg2: memref<16x1xi32, #tpu.memory_space<vmem>>, %arg3: memref<16x32xf32, #tpu.memory_space<vmem>>, %arg4: memref<1x16x1xf32, #tpu.memory_space<vmem>>, %arg5: memref<1x16x1xf32, #tpu.memory_space<vmem>>) attributes {dimension_semantics = [#tpu.dimension_semantics<parallel>, #tpu.dimension_semantics<arbitrary>], iteration_bounds = array<i64: 2, 1>, scalar_prefetch = 0 : i64, scratch_operands = 0 : i64, tpu.core_type = #tpu.core_type<tc>, window_params = [{transform_indices = @transform_0, window_bounds = array<i64: 16, 1>}, {transform_indices = @transform_1, window_bounds = array<i64: 16, 32>}, {transform_indices = @transform_2, window_bounds = array<i64: 1, 16, 1>}, {transform_indices = @transform_3, window_bounds = array<i64: 1, 16, 1>}]} {
    %c0_i32 = arith.constant 0 : i32
    %0 = arith.cmpi eq, %arg1, %c0_i32 : i32
    %1 = arith.extui %0 : i1 to i32
    %c0_i32_0 = arith.constant 0 : i32
    %2 = arith.cmpi ne, %1, %c0_i32_0 : i32
    scf.if %2 {
      %cst_21 = arith.constant 0.000000e+00 : f32
      %44 = vector.broadcast %cst_21 : f32 to vector<16x1xf32>
      %c0_22 = arith.constant 0 : index
      %c0_23 = arith.constant 0 : index
      %c0_24 = arith.constant 0 : index
      %45 = vector.load %arg4[%c0_22, %c0_23, %c0_24] : memref<1x16x1xf32, #tpu.memory_space<vmem>>, vector<1x16x1xf32>
      %46 = vector.shape_cast %45 : vector<1x16x1xf32> to vector<16x1xf32>
      %47 = vector.shape_cast %44 : vector<16x1xf32> to vector<1x16x1xf32>
      tpu.vector_store %arg4[%c0_22, %c0_23, %c0_24], %47 {strides = array<i32>} : memref<1x16x1xf32, #tpu.memory_space<vmem>>, vector<1x16x1xf32>,
      %cst_25 = arith.constant 0.000000e+00 : f32
      %48 = vector.broadcast %cst_25 : f32 to vector<16x1xf32>
      %c0_26 = arith.constant 0 : index
      %c0_27 = arith.constant 0 : index
      %c0_28 = arith.constant 0 : index
      %49 = vector.load %arg5[%c0_26, %c0_27, %c0_28] : memref<1x16x1xf32, #tpu.memory_space<vmem>>, vector<1x16x1xf32>
      %50 = vector.shape_cast %49 : vector<1x16x1xf32> to vector<16x1xf32>
      %51 = vector.shape_cast %48 : vector<16x1xf32> to vector<1x16x1xf32>
      tpu.vector_store %arg5[%c0_26, %c0_27, %c0_28], %51 {strides = array<i32>} : memref<1x16x1xf32, #tpu.memory_space<vmem>>, vector<1x16x1xf32>,
    } else {
    }
    %c0 = arith.constant 0 : index
    %c0_1 = arith.constant 0 : index
    %3 = vector.load %arg3[%c0, %c0_1] : memref<16x32xf32, #tpu.memory_space<vmem>>, vector<16x32xf32>
    %c0_2 = arith.constant 0 : index
    %c0_3 = arith.constant 0 : index
    %4 = vector.load %arg2[%c0_2, %c0_3] : memref<16x1xi32, #tpu.memory_space<vmem>>, vector<16x1xi32>
    %cst = arith.constant dense<0xFF800000> : vector<16xf32>
    %5 = vector.multi_reduction <maximumf>, %3, %cst [1] : vector<16x32xf32> to vector<16xf32>
    %6 = vector.shape_cast %5 : vector<16xf32> to vector<16x1xf32>
    %7 = vector.broadcast %6 : vector<16x1xf32> to vector<16x32xf32>
    %8 = arith.subf %3, %7 : vector<16x32xf32>
    %9 = math.exp %8 : vector<16x32xf32>
    %cst_4 = arith.constant dense<0.000000e+00> : vector<16xf32>
    %10 = vector.multi_reduction <add>, %9, %cst_4 [1] : vector<16x32xf32> to vector<16xf32>
    %11 = vector.shape_cast %10 : vector<16xf32> to vector<16x1xf32>
    %12 = tpu.reciprocal %11 : vector<16x1xf32> -> vector<16x1xf32>
    %13 = vector.broadcast %12 : vector<16x1xf32> to vector<16x32xf32>
    %14 = arith.mulf %9, %13 : vector<16x32xf32>
    %15 = math.exp %14 : vector<16x32xf32>
    %cst_5 = arith.constant dense<0.000000e+00> : vector<16xf32>
    %16 = vector.multi_reduction <add>, %15, %cst_5 [1] : vector<16x32xf32> to vector<16xf32>
    %17 = vector.shape_cast %16 : vector<16xf32> to vector<16x1xf32>
    %18 = math.log %17 : vector<16x1xf32>
    %19 = tpu.iota {dimensions = array<i32: 1>} : vector<16x32xi32>
    %20 = vector.broadcast %4 : vector<16x1xi32> to vector<16x32xi32>
    %21 = arith.cmpi eq, %19, %20 : vector<16x32xi32>
    %cst_6 = arith.constant 0.000000e+00 : f32
    %22 = vector.broadcast %cst_6 : f32 to vector<16x32xf32>
    %23 = arith.select %21, %14, %22 : vector<16x32xi1>, vector<16x32xf32>
    %cst_7 = arith.constant dense<0.000000e+00> : vector<16xf32>
    %24 = vector.multi_reduction <add>, %23, %cst_7 [1] : vector<16x32xf32> to vector<16xf32>
    %25 = vector.shape_cast %24 : vector<16xf32> to vector<16x1xf32>
    %26 = arith.subf %25, %18 : vector<16x1xf32>
    %c0_i32_8 = arith.constant 0 : i32
    %27 = vector.broadcast %c0_i32_8 : i32 to vector<16x1xi32>
    %28 = arith.cmpi ne, %4, %27 : vector<16x1xi32>
    %29 = arith.extui %28 : vector<16x1xi1> to vector<16x1xi32>
    %30 = arith.sitofp %29 : vector<16x1xi32> to vector<16x1xf32>
    %c0_9 = arith.constant 0 : index
    %c0_10 = arith.constant 0 : index
    %c0_11 = arith.constant 0 : index
    %31 = vector.load %arg4[%c0_9, %c0_10, %c0_11] : memref<1x16x1xf32, #tpu.memory_space<vmem>>, vector<1x16x1xf32>
    %32 = vector.shape_cast %31 : vector<1x16x1xf32> to vector<16x1xf32>
    %33 = arith.mulf %30, %26 : vector<16x1xf32>
    %34 = arith.addf %32, %33 : vector<16x1xf32>
    %c0_12 = arith.constant 0 : index
    %c0_13 = arith.constant 0 : index
    %c0_14 = arith.constant 0 : index
    %35 = vector.load %arg4[%c0_12, %c0_13, %c0_14] : memref<1x16x1xf32, #tpu.memory_space<vmem>>, vector<1x16x1xf32>
    %36 = vector.shape_cast %35 : vector<1x16x1xf32> to vector<16x1xf32>
    %37 = vector.shape_cast %34 : vector<16x1xf32> to vector<1x16x1xf32>
    tpu.vector_store %arg4[%c0_12, %c0_13, %c0_14], %37 {strides = array<i32>} : memref<1x16x1xf32, #tpu.memory_space<vmem>>, vector<1x16x1xf32>,
    %c0_15 = arith.constant 0 : index
    %c0_16 = arith.constant 0 : index
    %c0_17 = arith.constant 0 : index
    %38 = vector.load %arg5[%c0_15, %c0_16, %c0_17] : memref<1x16x1xf32, #tpu.memory_space<vmem>>, vector<1x16x1xf32>
    %39 = vector.shape_cast %38 : vector<1x16x1xf32> to vector<16x1xf32>
    %40 = arith.addf %39, %30 : vector<16x1xf32>
    %c0_18 = arith.constant 0 : index
    %c0_19 = arith.constant 0 : index
    %c0_20 = arith.constant 0 : index
    %41 = vector.load %arg5[%c0_18, %c0_19, %c0_20] : memref<1x16x1xf32, #tpu.memory_space<vmem>>, vector<1x16x1xf32>
    %42 = vector.shape_cast %41 : vector<1x16x1xf32> to vector<16x1xf32>
    %43 = vector.shape_cast %40 : vector<16x1xf32> to vector<1x16x1xf32>
    tpu.vector_store %arg5[%c0_18, %c0_19, %c0_20], %43 {strides = array<i32>} : memref<1x16x1xf32, #tpu.memory_space<vmem>>, vector<1x16x1xf32>,
    return
  }
  func.func @transform_0(%arg0: i32, %arg1: i32) -> (i32, i32) {
    %c1_i32 = arith.constant 1 : i32
    %0 = arith.muli %arg0, %c1_i32 : i32
    %1 = arith.addi %0, %arg1 : i32
    %c0_i32 = arith.constant 0 : i32
    %c0_i32_0 = arith.constant 0 : i32
    return %1, %c0_i32 : i32, i32
  }
  func.func @transform_1(%arg0: i32, %arg1: i32) -> (i32, i32) {
    %c1_i32 = arith.constant 1 : i32
    %0 = arith.muli %arg0, %c1_i32 : i32
    %1 = arith.addi %0, %arg1 : i32
    %c0_i32 = arith.constant 0 : i32
    %c0_i32_0 = arith.constant 0 : i32
    return %1, %c0_i32 : i32, i32
  }
  func.func @transform_2(%arg0: i32, %arg1: i32) -> (i32, i32, i32) {
    %c0_i32 = arith.constant 0 : i32
    %c0_i32_0 = arith.constant 0 : i32
    %c0_i32_1 = arith.constant 0 : i32
    return %arg0, %c0_i32, %c0_i32_0 : i32, i32, i32
  }
  func.func @transform_3(%arg0: i32, %arg1: i32) -> (i32, i32, i32) {
    %c0_i32 = arith.constant 0 : i32
    %c0_i32_0 = arith.constant 0 : i32
    %c0_i32_1 = arith.constant 0 : i32
    return %arg0, %c0_i32, %c0_i32_0 : i32, i32, i32
  }
}

</mosaic_0001>

<llo_original>
// kernel: tpu_custom_call.1
$region0: #{tpu_custom_call.1}
  #allocation0 [shape = 'u32[]', space=smem, size = 0x4, offset = 0x4, fixed_abs, tag = 'smem constant byte address 0x4 - core index']
  #allocation1 [shape = 'u32[144,128]{1,0:T(1,128)}', space=vmem, size = 0x12000, scoped, tag = 'internal scratch']
  %s0 = inlined_call_operand.vmem [shape: s32[32,1], index: 0, kind: input, shape index: {}]
  %s1 = inlined_call_operand.vmem [shape: f32[32,32], index: 1, kind: input, shape index: {}]
  %s2 = inlined_call_operand.vmem [shape: f32[2,16,1], index: 2, kind: output, shape index: {0}]
  %s3 = inlined_call_operand.vmem [shape: f32[2,16,1], index: 3, kind: output, shape index: {1}]
  %4 = xla_tuple %s2, %s3
  %s5 = sld [smem:[#allocation0]]
  $region53: #{tpu_custom_call.1} parent=0
    _
  %s7 = ssub.s32 1, %s5
  %s8 = scalar_select 0, %s7, %s5
  loop: start=0, step=1, limit=4
  $region2: #{tpu_custom_call.1} parent=0 // loop_pre_header
    _
  $region3: #{tpu_custom_call.1} parent=0 // loop_header
    %s10 = sphi 0, %s14
    %p11 = scmp.ge.s32.totalorder %s10, 4
    %s17 = sphi 0, %s29
    %s18 = sphi 0, %s25
    %s19 = sphi 0, %s17
    %s20 = sphi 0, %s18
    %s21 = sphi 0, %s19
    %s22 = sphi 0, %s20
    %s34 = sphi 0, %s36
    %s37 = sphi 0, %s34
    %s38 = sphi 0, %s37
    %s54 = sphi 0, %s38
    %s62 = sphi 0, %s64
    %s65 = sphi 0, %s62
    %s66 = sphi 0, %s65
    %s82 = sphi 0, %s66
    %s88 = sphi 0, %s90
    %s91 = sphi 0, %s88
    %s92 = sphi 0, %s91
    %s108 = sphi 0, %s92
    %s114 = sphi 0, %s116
    %s117 = sphi 0, %s114
    %s118 = sphi 0, %s117
    %s134 = sphi 0, %s118
  $region4: #{tpu_custom_call.1} parent=0 // loop_header_branch
    %13 = sbr.rel (%p11) target = $region8
  $region5: #{tpu_custom_call.1} parent=0 // loop_body
    %s15 = ssub.s32 %s10, 1
    %s16 = ssub.s32 %s10, 2
    %s23 = sadd.s32 1, %s18
    %p24 = scmp.ge.s32.totalorder %s23, 1
    %s25 = scalar_select %p24, 0, %s23
    %s26 = sadd.s32 1, %s17
    %s27 = scalar_select %p24, %s26, %s17
    %p28 = scmp.ge.s32.totalorder %s27, 2
    %s29 = scalar_select %p28, 0, %s27
    %s30 = sadd.s32 %s17, %s18
    %s31 = sadd.s32 %s29, %s25
    %s32 = ssub.s32 %s30, %s31
    %p33 = scmp.eq.s32.totalorder %s32, 0
    %s35 = sadd.s32 %s34, 1
    %s36 = scalar_select %p33, %s34, %s35
    %p39 = pneg %p33
    %p40 = scmp.eq.s32.totalorder %s10, 1
    %p41 = por %p39, %p40
    %p42 = scmp.ne.s32.totalorder %s34, %s37
    %p43 = scmp.eq.s32.totalorder %s10, 0
    %p44 = por %p42, %p43
    %p45 = scmp.ne.s32.totalorder %s34, %s37
    %p46 = scmp.eq.s32.totalorder %s15, 1
    %p47 = por %p45, %p46
    %p48 = scmp.ne.s32.totalorder %s37, %s38
    %p49 = scmp.eq.s32.totalorder %s15, 0
    %p50 = por %p48, %p49
    %p51 = scmp.ne.s32.totalorder %s37, %s38
    %p52 = scmp.eq.s32.totalorder %s16, 1
    %p53 = por %p51, %p52
    %p55 = scmp.ne.s32.totalorder %s38, %s54
    %p56 = scmp.eq.s32.totalorder %s16, 0
    %p57 = por %p55, %p56
    %s58 = sadd.s32 %s17, %s18
    %s59 = sadd.s32 %s29, %s25
    %s60 = ssub.s32 %s58, %s59
    %p61 = scmp.eq.s32.totalorder %s60, 0
    %s63 = sadd.s32 %s62, 1
    %s64 = scalar_select %p61, %s62, %s63
    %p67 = pneg %p61
    %p68 = scmp.eq.s32.totalorder %s10, 1
    %p69 = por %p67, %p68
    %p70 = scmp.ne.s32.totalorder %s62, %s65
    %p71 = scmp.eq.s32.totalorder %s10, 0
    %p72 = por %p70, %p71
    %p73 = scmp.ne.s32.totalorder %s62, %s65
    %p74 = scmp.eq.s32.totalorder %s15, 1
    %p75 = por %p73, %p74
    %p76 = scmp.ne.s32.totalorder %s65, %s66
    %p77 = scmp.eq.s32.totalorder %s15, 0
    %p78 = por %p76, %p77
    %p79 = scmp.ne.s32.totalorder %s65, %s66
    %p80 = scmp.eq.s32.totalorder %s16, 1
    %p81 = por %p79, %p80
    %p83 = scmp.ne.s32.totalorder %s66, %s82
    %p84 = scmp.eq.s32.totalorder %s16, 0
    %p85 = por %p83, %p84
    %s86 = ssub.s32 %s17, %s29
    %p87 = scmp.eq.s32.totalorder %s86, 0
    %s89 = sadd.s32 %s88, 1
    %s90 = scalar_select %p87, %s88, %s89
    %p93 = pneg %p87
    %p94 = scmp.eq.s32.totalorder %s10, 1
    %p95 = por %p93, %p94
    %p96 = scmp.ne.s32.totalorder %s88, %s91
    %p97 = scmp.eq.s32.totalorder %s10, 0
    %p98 = por %p96, %p97
    %p99 = scmp.ne.s32.totalorder %s88, %s91
    %p100 = scmp.eq.s32.totalorder %s15, 1
    %p101 = por %p99, %p100
    %p102 = scmp.ne.s32.totalorder %s91, %s92
    %p103 = scmp.eq.s32.totalorder %s15, 0
    %p104 = por %p102, %p103
    %p105 = scmp.ne.s32.totalorder %s91, %s92
    %p106 = scmp.eq.s32.totalorder %s16, 1
    %p107 = por %p105, %p106
    %p109 = scmp.ne.s32.totalorder %s92, %s108
    %p110 = scmp.eq.s32.totalorder %s16, 0
    %p111 = por %p109, %p110
    %s112 = ssub.s32 %s17, %s29
    %p113 = scmp.eq.s32.totalorder %s112, 0
    %s115 = sadd.s32 %s114, 1
    %s116 = scalar_select %p113, %s114, %s115
    %p119 = pneg %p113
    %p120 = scmp.eq.s32.totalorder %s10, 1
    %p121 = por %p119, %p120
    %p122 = scmp.ne.s32.totalorder %s114, %s117
    %p123 = scmp.eq.s32.totalorder %s10, 0
    %p124 = por %p122, %p123
    %p125 = scmp.ne.s32.totalorder %s114, %s117
    %p126 = scmp.eq.s32.totalorder %s15, 1
    %p127 = por %p125, %p126
    %p128 = scmp.ne.s32.totalorder %s117, %s118
    %p129 = scmp.eq.s32.totalorder %s15, 0
    %p130 = por %p128, %p129
    %p131 = scmp.ne.s32.totalorder %s117, %s118
    %p132 = scmp.eq.s32.totalorder %s16, 1
    %p133 = por %p131, %p132
    %p135 = scmp.ne.s32.totalorder %s118, %s134
    %p136 = scmp.eq.s32.totalorder %s16, 0
    %p137 = por %p135, %p136
    %p138 = scmp.le.s32.totalorder 1, %s10
    %p139 = scmp.lt.s32.totalorder %s10, 3
    %p140 = pnand %p138, %p139
    %p141 = pneg %p140
    // Predicated region
    $region9: #{tpu_custom_call.1} parent=5 // pred_check
      _
    $region10: #{tpu_custom_call.1} parent=5 // pred_check_branch
      %143 = sbr.rel (%p140) target = $region12
    $region11: #{tpu_custom_call.1} parent=5 // pred_region
      %s144 = ssub.s32 %s10, 1
    $region12: #{tpu_custom_call.1} parent=5 // pred_fallthru
      _
    %p145 = scmp.lt.s32.totalorder %s10, 2
    // Predicated region
    $region13: #{tpu_custom_call.1} parent=5 // pred_check
      %p146 = pneg %p145
    $region14: #{tpu_custom_call.1} parent=5 // pred_check_branch
      %148 = sbr.rel (%p146) target = $region16
    $region15: #{tpu_custom_call.1} parent=5 // pred_region
      // Predicated region
      $region17: #{tpu_custom_call.1} parent=15 // pred_check
        %p149 = pneg %p44
      $region18: #{tpu_custom_call.1} parent=15 // pred_check_branch
        %151 = sbr.rel (%p149) target = $region20
      $region19: #{tpu_custom_call.1} parent=15 // pred_region
        %s152 = sadd.s32 %s17, %s18
        %s153 = smul.u32 2, %s152
        %p154 = scmp.lt.s32.totalorder %s153, 3
        %s155 = scalar_select %p154, %s153, 3
        %s156 = smul.addr %s155, 8
        %s157 = scalar_lea.vmem %s0, %s156
        %s158 = sadd.s32 %s17, %s18
        %s159 = smul.u32 2, %s158
      $region20: #{tpu_custom_call.1} parent=15 // pred_fallthru
        _
      // Predicated region
      $region21: #{tpu_custom_call.1} parent=15 // pred_check
        %p160 = pneg %p72
      $region22: #{tpu_custom_call.1} parent=15 // pred_check_branch
        %162 = sbr.rel (%p160) target = $region24
      $region23: #{tpu_custom_call.1} parent=15 // pred_region
        %s163 = sadd.s32 %s17, %s18
        %s164 = smul.u32 2, %s163
        %p165 = scmp.lt.s32.totalorder %s164, 3
        %s166 = scalar_select %p165, %s164, 3
        %s167 = smul.addr %s166, 8
        %s168 = scalar_lea.vmem %s1, %s167
        %s169 = sadd.s32 %s17, %s18
        %s170 = smul.u32 2, %s169
      $region24: #{tpu_custom_call.1} parent=15 // pred_fallthru
        _
    $region16: #{tpu_custom_call.1} parent=5 // pred_fallthru
      _
    %p171 = scmp.le.s32.totalorder 1, %s10
    %p172 = scmp.lt.s32.totalorder %s10, 3
    %p173 = pnand %p171, %p172
    %p174 = pneg %p173
    // Predicated region
    $region25: #{tpu_custom_call.1} parent=5 // pred_check
      _
    $region26: #{tpu_custom_call.1} parent=5 // pred_check_branch
      %176 = sbr.rel (%p173) target = $region28
    $region27: #{tpu_custom_call.1} parent=5 // pred_region
      %s177 = ssub.s32 %s10, 1
      %s178 = sadd.s32 %s19, %s20
      %s179 = smul.u32 2, %s178
      %p180 = scmp.lt.s32.totalorder %s179, 3
      %s181 = scalar_select %p180, %s179, 3
      %s182 = smul.addr %s181, 8
      %s183 = scalar_lea.vmem %s0, %s182
      %p184 = pneg %p50
      %p185 = pneg %p47
      %s186 = sadd.s32 %s19, %s20
      %s187 = smul.u32 2, %s186
      %p188 = scmp.lt.s32.totalorder %s187, 3
      %s189 = scalar_select %p188, %s187, 3
      %s190 = smul.addr %s189, 8
      %s191 = scalar_lea.vmem %s1, %s190
      %p192 = pneg %p78
      %p193 = pneg %p75
      %p194 = pneg %p104
      %p195 = pneg %p101
      %p196 = scmp.lt.s32.totalorder %s19, 1
      %s197 = scalar_select %p196, %s19, 1
      %s198 = smul.addr %s197, 2
      %s199 = smul.addr %s198, 8
      %s200 = scalar_lea.vmem %s2, %s199
      %p201 = pneg %p130
      %p202 = pneg %p127
      %p203 = scmp.lt.s32.totalorder %s19, 1
      %s204 = scalar_select %p203, %s19, 1
      %s205 = smul.addr %s204, 2
      %s206 = smul.addr %s205, 8
      %s207 = scalar_lea.vmem %s3, %s206
      %s208 = sadd.s32 %s19, %s20
      %s209 = smul.u32 2, %s208
      %p210 = scmp.lt.s32.totalorder %s209, 3
      %s211 = scalar_select %p210, %s209, 3
      %s212 = smul.addr %s211, 8
      %s213 = scalar_lea.vmem %s0, %s212
      %s214 = sadd.s32 %s19, %s20
      %s215 = smul.u32 2, %s214
      %s216 = sadd.s32 %s19, %s20
      %s217 = smul.u32 2, %s216
      %p218 = scmp.lt.s32.totalorder %s217, 3
      %s219 = scalar_select %p218, %s217, 3
      %s220 = smul.addr %s219, 8
      %s221 = scalar_lea.vmem %s1, %s220
      %s222 = sadd.s32 %s19, %s20
      %s223 = smul.u32 2, %s222
      %p224 = scmp.lt.s32.totalorder %s19, 1
      %s225 = scalar_select %p224, %s19, 1
      %s226 = smul.addr %s225, 2
      %s227 = smul.addr %s226, 8
      %s228 = scalar_lea.vmem %s2, %s227
      %p229 = scmp.lt.s32.totalorder %s19, 1
      %s230 = scalar_select %p229, %s19, 1
      %s231 = smul.addr %s230, 2
      %s232 = smul.addr %s231, 8
      %s233 = scalar_lea.vmem %s3, %s232
      %p234 = scmp.eq.s32.totalorder %s20, 0
      // Predicated region
      $region29: #{tpu_custom_call.1} parent=27 // pred_check
        %p235 = pneg %p234
      $region30: #{tpu_custom_call.1} parent=27 // pred_check_branch
        %237 = sbr.rel (%p235) target = $region32
      $region31: #{tpu_custom_call.1} parent=27 // pred_region
        %vm238 = vcmask 7168
        %239 = vst.msk [vmem:[%s228] sm:$0xff] %vm238, 0.0
        %240 = vst.msk [vmem:[%s228 + $0x8] sm:$0xff] %vm238, 0.0
        %241 = vst.msk [vmem:[%s233] sm:$0xff] %vm238, 0.0
        %242 = vst.msk [vmem:[%s233 + $0x8] sm:$0xff] %vm238, 0.0
      $region32: #{tpu_custom_call.1} parent=27 // pred_fallthru
        _
      %v243 = vld [vmem:[%s221] sm:$0xff]
      %v244 = vld [vmem:[%s221 + $0x8] sm:$0xff]
      %v245 = vld [vmem:[%s213] sm:$0xff]
      %v246 = vld [vmem:[%s213 + $0x8] sm:$0xff]
      %vm247 = vcmask 261120
      %v248 = vsel %vm247, %v243, -inf
      %249 = vmax.xlane.f32.xlu0 %v248
      %v250 = vpop.xlane.xlu0 %249
      %v251 = vsel %vm247, %v244, -inf
      %252 = vmax.xlane.f32.xlu0 %v251
      %v253 = vpop.xlane.xlu0 %252
      %v254 = vsub.f32 %v243, %v250
      %v255 = vsub.f32 %v244, %v253
      %v256 = vmul.f32 %v254, 1.442695
      %v257 = vpow.pop %v256
      %v258 = vmul.f32 %v255, 1.442695
      %v259 = vpow.pop %v258
      %v260 = vsel %vm247, %v257, 0.0
      %261 = vadd.xlane.f32.xlu0 %v260
      %v262 = vpop.xlane.xlu0 %261
      %v263 = vsel %vm247, %v259, 0.0
      %264 = vadd.xlane.f32.xlu0 %v263
      %v265 = vpop.xlane.xlu0 %264
      %v266 = vrcp.pop %v262
      %v267 = vrcp.pop %v265
      %v268 = vmul.f32 %v257, %v266
      %v269 = vmul.f32 %v259, %v267
      %v270 = vmul.f32 %v268, 1.442695
      %v271 = vpow.pop %v270
      %v272 = vmul.f32 %v269, 1.442695
      %v273 = vpow.pop %v272
      %v274 = vsel %vm247, %v271, 0.0
      %275 = vadd.xlane.f32.xlu0 %v274
      %v276 = vpop.xlane.xlu0 %275
      %v277 = vsel %vm247, %v273, 0.0
      %278 = vadd.xlane.f32.xlu0 %v277
      %v279 = vpop.xlane.xlu0 %278
      %v280 = vlog2.pop %v276
      %v281 = vmul.f32 %v280, 0.6931472
      %v282 = vlog2.pop %v279
      %v283 = vmul.f32 %v282, 0.6931472
      %v284 = vlaneseq
      %v285 = vand.u32 %v284, 127
      %286 = vset.pattern.permute.xlu0 0
      %287 = vperm.xlu0 %286, %v245
      %v288 = vpop.permute.xlu0 %287
      %289 = vset.pattern.permute.xlu0 0
      %290 = vperm.xlu0 %289, %v246
      %v291 = vpop.permute.xlu0 %290
      %vm292 = vcmp.eq.s32.totalorder %v285, %v288
      %vm293 = vcmp.eq.s32.totalorder %v285, %v291
      %v294 = vsel %vm292, %v268, 0.0
      %v295 = vsel %vm293, %v269, 0.0
      %v296 = vsel %vm247, %v294, 0.0
      %297 = vadd.xlane.f32.xlu0 %v296
      %v298 = vpop.xlane.xlu0 %297
      %v299 = vsel %vm247, %v295, 0.0
      %300 = vadd.xlane.f32.xlu0 %v299
      %v301 = vpop.xlane.xlu0 %300
      %v302 = vsub.f32 %v298, %v281
      %v303 = vsub.f32 %v301, %v283
      %vm304 = vcmp.ne.s32.totalorder %v245, 0
      %vm305 = vcmp.ne.s32.totalorder %v246, 0
      %v306 = vsel %vm304, 1, 0
      %v307 = vsel %vm305, 1, 0
      %v308 = vcvt.s32.f32 %v306
      %v309 = vcvt.s32.f32 %v307
      %v310 = vld [vmem:[%s228] sm:$0xff]
      %v311 = vld [vmem:[%s228 + $0x8] sm:$0xff]
      %v312 = vmul.f32 %v308, %v302
      %v313 = vmul.f32 %v309, %v303
      %v314 = vadd.f32 %v310, %v312
      %v315 = vadd.f32 %v311, %v313
      %vm316 = vcmask 7168
      %317 = vst.msk [vmem:[%s228] sm:$0xff] %vm316, %v314
      %318 = vst.msk [vmem:[%s228 + $0x8] sm:$0xff] %vm316, %v315
      %v319 = vld [vmem:[%s233] sm:$0xff]
      %v320 = vld [vmem:[%s233 + $0x8] sm:$0xff]
      %v321 = vadd.f32 %v319, %v308
      %v322 = vadd.f32 %v320, %v309
      %323 = vst.msk [vmem:[%s233] sm:$0xff] %vm316, %v321
      %324 = vst.msk [vmem:[%s233 + $0x8] sm:$0xff] %vm316, %v322
      %p325 = scmp.lt.s32.totalorder %s19, 1
      %s326 = scalar_select %p325, %s19, 1
      %s327 = smul.addr %s326, 2
      %s328 = smul.addr %s327, 8
      %s329 = scalar_lea.vmem %s2, %s328
      %p330 = scmp.lt.s32.totalorder %s19, 1
      %s331 = scalar_select %p330, %s19, 1
      %s332 = smul.addr %s331, 2
      %s333 = smul.addr %s332, 8
      %s334 = scalar_lea.vmem %s3, %s333
      // Predicated region
      $region33: #{tpu_custom_call.1} parent=27 // pred_check
        %p335 = pneg %p101
      $region34: #{tpu_custom_call.1} parent=27 // pred_check_branch
        %337 = sbr.rel (%p335) target = $region36
      $region35: #{tpu_custom_call.1} parent=27 // pred_region
        _
      $region36: #{tpu_custom_call.1} parent=27 // pred_fallthru
        _
      // Predicated region
      $region37: #{tpu_custom_call.1} parent=27 // pred_check
        %p338 = pneg %p127
      $region38: #{tpu_custom_call.1} parent=27 // pred_check_branch
        %340 = sbr.rel (%p338) target = $region40
      $region39: #{tpu_custom_call.1} parent=27 // pred_region
        _
      $region40: #{tpu_custom_call.1} parent=27 // pred_fallthru
        _
    $region28: #{tpu_custom_call.1} parent=5 // pred_fallthru
      _
    %p341 = scmp.le.s32.totalorder 2, %s10
    // Predicated region
    $region41: #{tpu_custom_call.1} parent=5 // pred_check
      %p342 = pneg %p341
    $region42: #{tpu_custom_call.1} parent=5 // pred_check_branch
      %344 = sbr.rel (%p342) target = $region44
    $region43: #{tpu_custom_call.1} parent=5 // pred_region
      %s345 = ssub.s32 %s10, 2
      // Predicated region
      $region45: #{tpu_custom_call.1} parent=43 // pred_check
        %p346 = pneg %p107
      $region46: #{tpu_custom_call.1} parent=43 // pred_check_branch
        %348 = sbr.rel (%p346) target = $region48
      $region47: #{tpu_custom_call.1} parent=43 // pred_region
        %p349 = scmp.lt.s32.totalorder %s21, 1
        %s350 = scalar_select %p349, %s21, 1
        %s351 = smul.addr %s350, 2
        %s352 = smul.addr %s351, 8
        %s353 = scalar_lea.vmem %s2, %s352
      $region48: #{tpu_custom_call.1} parent=43 // pred_fallthru
        _
      // Predicated region
      $region49: #{tpu_custom_call.1} parent=43 // pred_check
        %p354 = pneg %p133
      $region50: #{tpu_custom_call.1} parent=43 // pred_check_branch
        %356 = sbr.rel (%p354) target = $region52
      $region51: #{tpu_custom_call.1} parent=43 // pred_region
        %p357 = scmp.lt.s32.totalorder %s21, 1
        %s358 = scalar_select %p357, %s21, 1
        %s359 = smul.addr %s358, 2
        %s360 = smul.addr %s359, 8
        %s361 = scalar_lea.vmem %s3, %s360
      $region52: #{tpu_custom_call.1} parent=43 // pred_fallthru
        _
    $region44: #{tpu_custom_call.1} parent=5 // pred_fallthru
      _
  $region6: #{tpu_custom_call.1} parent=0 // loop_footer
    %s14 = sadd.s32 1, %s10
  $region7: #{tpu_custom_call.1} parent=0 // loop_footer_branch
    %9 = sbr.rel target = $region3
  $region8: #{tpu_custom_call.1} parent=0 // loop_exit
    _

</llo_original>
